<compile_context>
chip_gen: v7x
topology: tpu7x:2x2x1
jax: 0.10.0
libtpu: 0.0.40
codegen_flags: <defaults>
</compile_context>

<pallas_src>
import jax
import jax.numpy as jnp
import numpy as np
from jax.experimental import pallas as pl
from jax.experimental.pallas import tpu as pltpu


def _round_up(x, m):
    return (x + m - 1) // m * m


def _round_down(x, m):
    return max(m, (x // m) * m)


def _vmem_limit_bytes():
    """Scoped-VMEM limit: 3/4 of physical, capped at 64 MiB.

    v5e/v6e: 128 MiB physical -> 64 MiB limit; v7x: 64 MiB physical -> 48 MiB.
    """
    phys = 64 * 1024 * 1024  # conservative fallback (v7x)
    try:
        info = pltpu.get_tpu_info()
        phys = int(getattr(info, "vmem_capacity_bytes", phys))
    except Exception:
        pass
    return min((phys * 3) // 4, 64 * 1024 * 1024)


def fcomb_kernel(x_ref, zb_ref, w1t_ref, w2t_ref, b2_ref, w3t_ref, b3_ref, o_ref):
    # x_ref : (F, Tn) f32     streamed feature tile (channels on sublanes,
    #                         voxels on lanes) -- cast to bf16 in-kernel
    # zb_ref: (F, 1)  f32     per-batch fused bias  (z @ W1[F:] + b1)
    # w*t   : (out_ch, in_ch) weights, compute dtype (bf16), VMEM-resident
    # b*    : (out_ch, 1) f32
    # o_ref : (num_classes, Tn) f32
    x = x_ref[...].astype(w1t_ref.dtype)   # in-kernel cast (no extra HBM pass)

    # layer 1: Conv3D(F+L -> F, k=1) + ReLU   (z part pre-folded into zb)
    h = jnp.dot(w1t_ref[...], x, preferred_element_type=jnp.float32)
    h = jnp.maximum(h + zb_ref[...], 0.0)

    # layer 2: Conv3D(F -> F, k=1) + ReLU
    h = jnp.dot(w2t_ref[...], h.astype(w2t_ref.dtype),
                preferred_element_type=jnp.float32)
    h = jnp.maximum(h + b2_ref[...], 0.0)

    # last layer: Conv3d(F -> num_classes, k=1), no activation
    out = jnp.dot(w3t_ref[...], h.astype(w3t_ref.dtype),
                  preferred_element_type=jnp.float32) + b3_ref[...]
    o_ref[...] = out.astype(o_ref.dtype)


def fcomb_forward(feature_map, z, params, *, tile_n=None,
                  compute_dtype=jnp.bfloat16):
    """feature_map: (B, F, H, W, D) float32; z: (B, L) float32.

    Returns (B, num_classes, H, W, D) float32.
    """
    w1, b1, w2, b2, w3, b3 = params            # w: (C_in, C_out), b: (1, C_out)
    B, F, H, W, D = feature_map.shape
    L = z.shape[1]
    assert w1.shape[0] == F + L
    C_out = w3.shape[1]
    N_vox = H * W * D

    # --- fold z into a per-batch layer-1 bias (exact: concat + 1x1 conv identity)
    z_bias = (z.astype(jnp.float32) @ w1[F:, :].astype(jnp.float32)
              + b1[0].astype(jnp.float32))              # (B, F)
    z_bias = z_bias[:, :, None]                         # (B, F, 1)

    # --- weights in (out_ch, in_ch) orientation; resident, so bf16 is free
    w1t = jnp.transpose(w1[:F, :]).astype(compute_dtype)   # (F, F)
    w2t = jnp.transpose(w2).astype(compute_dtype)          # (F, F)
    w3t = jnp.transpose(w3).astype(compute_dtype)          # (C_out, F)
    b2c = b2.T.astype(jnp.float32)                          # (F, 1)
    b3c = b3.T.astype(jnp.float32)                          # (C_out, 1)

    # --- pick the largest voxel tile the VMEM budget allows
    vmem_limit = _vmem_limit_bytes()
    in_bytes = feature_map.dtype.itemsize      # streamed as-is (f32), no cast pass
    per_lane = 2 * (F * in_bytes + C_out * 4)  # double-buffered in + out tiles
    tile_cap = _round_down((vmem_limit // 2) // per_lane, 128)  # keep headroom
    if tile_n is None:
        tile_n = 32768
    tile_n = _round_up(max(tile_n, 128), 128)
    tile_n_eff = min(tile_n, tile_cap, _round_up(N_vox, 128))

    # --- native channels-first layout, voxels flattened onto the lane axis.
    # No jnp.pad, no astype: ragged tail is handled by Pallas (padded edge
    # reads, masked edge stores).
    x = feature_map.reshape(B, F, N_vox)

    grid = (B, pl.cdiv(N_vox, tile_n_eff))

    out_flat = pl.pallas_call(
        fcomb_kernel,
        out_shape=jax.ShapeDtypeStruct((B, C_out, N_vox), jnp.float32),
        grid_spec=pltpu.PrefetchScalarGridSpec(
            num_scalar_prefetch=0,
            grid=grid,
            in_specs=[
                # streamed activations: (F, tile_n) per (batch, voxel-tile)
                pl.BlockSpec((None, F, tile_n_eff), lambda b, i: (b, 0, i)),
                # per-batch fused bias
                pl.BlockSpec((None, F, 1), lambda b, i: (b, 0, 0)),
                # weights / biases: resident in VMEM (constant index maps)
                pl.BlockSpec((F, F), lambda b, i: (0, 0)),
                pl.BlockSpec((F, F), lambda b, i: (0, 0)),
                pl.BlockSpec((F, 1), lambda b, i: (0, 0)),
                pl.BlockSpec((C_out, F), lambda b, i: (0, 0)),
                pl.BlockSpec((C_out, 1), lambda b, i: (0, 0)),
            ],
            out_specs=pl.BlockSpec((None, C_out, tile_n_eff),
                                   lambda b, i: (b, 0, i)),
        ),
        compiler_params=pltpu.CompilerParams(
            dimension_semantics=("parallel", "parallel"),
            vmem_limit_bytes=vmem_limit,
        ),
    )(x, z_bias, w1t, w2t, b2c, w3t, b3c)

    # reshape is a view (exact shape); no transposes, pads or slices needed
    return out_flat.reshape(B, C_out, H, W, D)


def make_params(key, num_filters0, latent_dim, num_classes):
    """Deterministic synthetic weights (kernel_size=1 convs == dense layers).
    Weight layout: (C_in, C_out); bias: (1, C_out)."""
    # TODO(synk): orthogonal / truncated-normal torch initializers not replicated;
    # synthetic Gaussian weights stand in for them.
    k1, k2, k3, k4, k5, k6 = jax.random.split(key, 6)
    c_in = num_filters0 + latent_dim
    w1 = 0.1 * jax.random.normal(k1, (c_in, num_filters0), jnp.float32)
    b1 = 0.01 * jax.random.normal(k2, (1, num_filters0), jnp.float32)
    w2 = 0.1 * jax.random.normal(k3, (num_filters0, num_filters0), jnp.float32)
    b2 = 0.01 * jax.random.normal(k4, (1, num_filters0), jnp.float32)
    w3 = 0.1 * jax.random.normal(k5, (num_filters0, num_classes), jnp.float32)
    b3 = 0.01 * jax.random.normal(k6, (1, num_classes), jnp.float32)
    return (w1, b1, w2, b2, w3, b3)


def fcomb_reference(feature_map, z, params):
    """Plain-JAX f32 reference of the original module math (broadcast+concat)."""
    w1, b1, w2, b2, w3, b3 = params
    B, F, H, W, D = feature_map.shape
    L = z.shape[1]
    z_b = jnp.broadcast_to(z[:, :, None, None, None], (B, L, H, W, D))
    x = jnp.concatenate([feature_map, z_b], axis=1)            # (B, F+L, H, W, D)
    h = jnp.einsum('bchwd,cf->bfhwd', x, w1) + b1[0][None, :, None, None, None]
    h = jnp.maximum(h, 0.0)
    h = jnp.einsum('bchwd,cf->bfhwd', h, w2) + b2[0][None, :, None, None, None]
    h = jnp.maximum(h, 0.0)
    o = jnp.einsum('bchwd,ck->bkhwd', h, w3) + b3[0][None, :, None, None, None]
    return o


if __name__ == "__main__":
    # Module hyperparameters (no_convs_fcomb = 3 -> two Conv3D+ReLU + last conv)
    num_filters = [32]
    latent_dim = 6
    num_classes = 4

    # Small input shapes consistent with the forward pass.
    B, H, W, D = 2, 8, 8, 8

    key = jax.random.PRNGKey(0)
    k_fm, k_z, k_p = jax.random.split(key, 3)
    feature_map = jax.random.normal(k_fm, (B, num_filters[0], H, W, D), jnp.float32)
    z = jax.random.normal(k_z, (B, latent_dim), jnp.float32)
    params = make_params(k_p, num_filters[0], latent_dim, num_classes)

    out = fcomb_forward(feature_map, z, params)
    out = jax.block_until_ready(out)

    ref = jax.block_until_ready(fcomb_reference(feature_map, z, params))
    assert out.shape == (B, num_classes, H, W, D)
    # tolerance accounts for bf16 MXU operands (f32 accumulation, f32 streaming)
    np.testing.assert_allclose(np.asarray(out), np.asarray(ref),
                               rtol=2e-2, atol=2e-2)

    print("KERNEL_OK")
</pallas_src>

<mosaic_0001>
module attributes {stable_mosaic.version = 11 : i64} {
  func.func @fcomb_kernel(%arg0: i32, %arg1: i32, %arg2: memref<1x32x512xf32, #tpu.memory_space<vmem>>, %arg3: memref<1x32x1xf32, #tpu.memory_space<vmem>>, %arg4: memref<32x32xbf16, #tpu.memory_space<vmem>>, %arg5: memref<32x32xbf16, #tpu.memory_space<vmem>>, %arg6: memref<32x1xf32, #tpu.memory_space<vmem>>, %arg7: memref<4x32xbf16, #tpu.memory_space<vmem>>, %arg8: memref<4x1xf32, #tpu.memory_space<vmem>>, %arg9: memref<1x4x512xf32, #tpu.memory_space<vmem>>) attributes {dimension_semantics = [#tpu.dimension_semantics<parallel>, #tpu.dimension_semantics<parallel>], iteration_bounds = array<i64: 2, 1>, scalar_prefetch = 0 : i64, scratch_operands = 0 : i64, tpu.core_type = #tpu.core_type<tc>, window_params = [{transform_indices = @transform_0, window_bounds = array<i64: 1, 32, 512>}, {transform_indices = @transform_1, window_bounds = array<i64: 1, 32, 1>}, {pipeline_mode = #tpu.pipeline_mode<synchronous>, transform_indices = @transform_2, window_bounds = array<i64: 32, 32>}, {pipeline_mode = #tpu.pipeline_mode<synchronous>, transform_indices = @transform_3, window_bounds = array<i64: 32, 32>}, {pipeline_mode = #tpu.pipeline_mode<synchronous>, transform_indices = @transform_4, window_bounds = array<i64: 32, 1>}, {pipeline_mode = #tpu.pipeline_mode<synchronous>, transform_indices = @transform_5, window_bounds = array<i64: 4, 32>}, {pipeline_mode = #tpu.pipeline_mode<synchronous>, transform_indices = @transform_6, window_bounds = array<i64: 4, 1>}, {transform_indices = @transform_7, window_bounds = array<i64: 1, 4, 512>}]} {
    %c0 = arith.constant 0 : index
    %c0_0 = arith.constant 0 : index
    %c0_1 = arith.constant 0 : index
    %0 = vector.load %arg2[%c0, %c0_0, %c0_1] : memref<1x32x512xf32, #tpu.memory_space<vmem>>, vector<1x32x512xf32>
    %1 = vector.shape_cast %0 : vector<1x32x512xf32> to vector<32x512xf32>
    %2 = arith.truncf %1 : vector<32x512xf32> to vector<32x512xbf16>
    %c0_2 = arith.constant 0 : index
    %c0_3 = arith.constant 0 : index
    %3 = vector.load %arg4[%c0_2, %c0_3] : memref<32x32xbf16, #tpu.memory_space<vmem>>, vector<32x32xbf16>
    %cst = arith.constant dense<0.000000e+00> : vector<32x512xf32>
    %4 = tpu.matmul %3, %2, %cst {dimension_numbers = #tpu.dot_dimension_numbers<[1], [0], [0], [1], [0, 0, 1, 1], [], []>} : vector<32x32xbf16>, vector<32x512xbf16>, vector<32x512xf32> -> vector<32x512xf32>
    %c0_4 = arith.constant 0 : index
    %c0_5 = arith.constant 0 : index
    %c0_6 = arith.constant 0 : index
    %5 = vector.load %arg3[%c0_4, %c0_5, %c0_6] : memref<1x32x1xf32, #tpu.memory_space<vmem>>, vector<1x32x1xf32>
    %6 = vector.shape_cast %5 : vector<1x32x1xf32> to vector<32x1xf32>
    %7 = vector.broadcast %6 : vector<32x1xf32> to vector<32x512xf32>
    %8 = arith.addf %4, %7 : vector<32x512xf32>
    %cst_7 = arith.constant 0.000000e+00 : f32
    %9 = vector.broadcast %cst_7 : f32 to vector<32x512xf32>
    %10 = arith.maximumf %8, %9 : vector<32x512xf32>
    %c0_8 = arith.constant 0 : index
    %c0_9 = arith.constant 0 : index
    %11 = vector.load %arg5[%c0_8, %c0_9] : memref<32x32xbf16, #tpu.memory_space<vmem>>, vector<32x32xbf16>
    %12 = arith.truncf %10 : vector<32x512xf32> to vector<32x512xbf16>
    %cst_10 = arith.constant dense<0.000000e+00> : vector<32x512xf32>
    %13 = tpu.matmul %11, %12, %cst_10 {dimension_numbers = #tpu.dot_dimension_numbers<[1], [0], [0], [1], [0, 0, 1, 1], [], []>} : vector<32x32xbf16>, vector<32x512xbf16>, vector<32x512xf32> -> vector<32x512xf32>
    %c0_11 = arith.constant 0 : index
    %c0_12 = arith.constant 0 : index
    %14 = vector.load %arg6[%c0_11, %c0_12] : memref<32x1xf32, #tpu.memory_space<vmem>>, vector<32x1xf32>
    %15 = vector.broadcast %14 : vector<32x1xf32> to vector<32x512xf32>
    %16 = arith.addf %13, %15 : vector<32x512xf32>
    %cst_13 = arith.constant 0.000000e+00 : f32
    %17 = vector.broadcast %cst_13 : f32 to vector<32x512xf32>
    %18 = arith.maximumf %16, %17 : vector<32x512xf32>
    %c0_14 = arith.constant 0 : index
    %c0_15 = arith.constant 0 : index
    %19 = vector.load %arg7[%c0_14, %c0_15] : memref<4x32xbf16, #tpu.memory_space<vmem>>, vector<4x32xbf16>
    %20 = arith.truncf %18 : vector<32x512xf32> to vector<32x512xbf16>
    %cst_16 = arith.constant dense<0.000000e+00> : vector<4x512xf32>
    %21 = tpu.matmul %19, %20, %cst_16 {dimension_numbers = #tpu.dot_dimension_numbers<[1], [0], [0], [1], [0, 0, 1, 1], [], []>} : vector<4x32xbf16>, vector<32x512xbf16>, vector<4x512xf32> -> vector<4x512xf32>
    %c0_17 = arith.constant 0 : index
    %c0_18 = arith.constant 0 : index
    %22 = vector.load %arg8[%c0_17, %c0_18] : memref<4x1xf32, #tpu.memory_space<vmem>>, vector<4x1xf32>
    %23 = vector.broadcast %22 : vector<4x1xf32> to vector<4x512xf32>
    %24 = arith.addf %21, %23 : vector<4x512xf32>
    %c0_19 = arith.constant 0 : index
    %c0_20 = arith.constant 0 : index
    %c0_21 = arith.constant 0 : index
    %25 = vector.load %arg9[%c0_19, %c0_20, %c0_21] : memref<1x4x512xf32, #tpu.memory_space<vmem>>, vector<1x4x512xf32>
    %26 = vector.shape_cast %25 : vector<1x4x512xf32> to vector<4x512xf32>
    %27 = vector.shape_cast %24 : vector<4x512xf32> to vector<1x4x512xf32>
    tpu.vector_store %arg9[%c0_19, %c0_20, %c0_21], %27 {strides = array<i32>} : memref<1x4x512xf32, #tpu.memory_space<vmem>>, vector<1x4x512xf32>,
    return
  }
  func.func @transform_0(%arg0: i32, %arg1: i32) -> (i32, i32, i32) {
    %c0_i32 = arith.constant 0 : i32
    %c0_i32_0 = arith.constant 0 : i32
    return %arg0, %c0_i32, %arg1 : i32, i32, i32
  }
  func.func @transform_1(%arg0: i32, %arg1: i32) -> (i32, i32, i32) {
    %c0_i32 = arith.constant 0 : i32
    %c0_i32_0 = arith.constant 0 : i32
    %c0_i32_1 = arith.constant 0 : i32
    return %arg0, %c0_i32, %c0_i32_0 : i32, i32, i32
  }
  func.func @transform_2(%arg0: i32, %arg1: i32) -> (i32, i32) {
    %c0_i32 = arith.constant 0 : i32
    %c0_i32_0 = arith.constant 0 : i32
    %c0_i32_1 = arith.constant 0 : i32
    return %c0_i32, %c0_i32_0 : i32, i32
  }
  func.func @transform_3(%arg0: i32, %arg1: i32) -> (i32, i32) {
    %c0_i32 = arith.constant 0 : i32
    %c0_i32_0 = arith.constant 0 : i32
    %c0_i32_1 = arith.constant 0 : i32
    return %c0_i32, %c0_i32_0 : i32, i32
  }
  func.func @transform_4(%arg0: i32, %arg1: i32) -> (i32, i32) {
    %c0_i32 = arith.constant 0 : i32
    %c0_i32_0 = arith.constant 0 : i32
    %c0_i32_1 = arith.constant 0 : i32
    return %c0_i32, %c0_i32_0 : i32, i32
  }
  func.func @transform_5(%arg0: i32, %arg1: i32) -> (i32, i32) {
    %c0_i32 = arith.constant 0 : i32
    %c0_i32_0 = arith.constant 0 : i32
    %c0_i32_1 = arith.constant 0 : i32
    return %c0_i32, %c0_i32_0 : i32, i32
  }
  func.func @transform_6(%arg0: i32, %arg1: i32) -> (i32, i32) {
    %c0_i32 = arith.constant 0 : i32
    %c0_i32_0 = arith.constant 0 : i32
    %c0_i32_1 = arith.constant 0 : i32
    return %c0_i32, %c0_i32_0 : i32, i32
  }
  func.func @transform_7(%arg0: i32, %arg1: i32) -> (i32, i32, i32) {
    %c0_i32 = arith.constant 0 : i32
    %c0_i32_0 = arith.constant 0 : i32
    return %arg0, %c0_i32, %arg1 : i32, i32, i32
  }
}

</mosaic_0001>

<llo_original>
// kernel: tpu_custom_call.1
$region0: #{tpu_custom_call.1}
  #allocation0 [shape = 'u32[]', space=smem, size = 0x4, offset = 0x4, fixed_abs, tag = 'smem constant byte address 0x4 - core index']
  #allocation1 [shape = 'u32[144,128]{1,0:T(1,128)}', space=vmem, size = 0x12000, scoped, tag = 'internal scratch']
  %s0 = inlined_call_operand.hbm [shape: f32[2,32,512], index: 0, kind: input, shape index: {}]
  %s1 = inlined_call_operand.vmem [shape: f32[2,32,1], index: 1, kind: input, shape index: {}]
  %s2 = inlined_call_operand.vmem [shape: bf16[32,32], index: 2, kind: input, shape index: {}]
  %s3 = inlined_call_operand.vmem [shape: bf16[32,32], index: 3, kind: input, shape index: {}]
  %s4 = inlined_call_operand.vmem [shape: f32[32,1], index: 4, kind: input, shape index: {}]
  %s5 = inlined_call_operand.vmem [shape: bf16[4,32], index: 5, kind: input, shape index: {}]
  %s6 = inlined_call_operand.vmem [shape: f32[4,1], index: 6, kind: input, shape index: {}]
  %s7 = inlined_call_operand.hbm [shape: f32[2,4,512], index: 7, kind: output, shape index: {}]
  %s8 = sld [smem:[#allocation0]]
  $region65: #{tpu_custom_call.1} parent=0
    _
  %s10 = ssub.s32 1, %s8
  %s11 = scalar_select 0, %s10, %s8
  $region1: #{tpu_custom_call.1} parent=0
    #allocation2 [shape = 'u8[131072]{0}', space=vmem, size = 0x20000, scoped, tag = 'input window, operand 0']
    #allocation3 [shape = 's32[2]{0}', space=sflag, size = 0x8, scoped, tag = 'scoped memory for tpu_custom_call.1']
    #allocation4 [shape = 's32[2]{0}', space=sflag, size = 0x8, scoped, tag = 'scoped memory for tpu_custom_call.1']
    #allocation5 [shape = 'u8[16384]{0}', space=vmem, size = 0x4000, scoped, tag = 'output window, operand 0']
    %12 = vsyncpa [#allocation3], 0
    %s13 = scalar_lea.sflag [#allocation3], 1
    %14 = vsyncpa %s13, 0
    %15 = vsyncpa [#allocation4], 0
    %s16 = scalar_lea.sflag [#allocation4], 1
    %17 = vsyncpa %s16, 0
    loop: start=0, step=1, limit=4
    $region2: #{tpu_custom_call.1} parent=1 // loop_pre_header
      _
    $region3: #{tpu_custom_call.1} parent=1 // loop_header
      %s19 = sphi 0, %s23
      %p20 = scmp.ge.s32.totalorder %s19, 4
      %s26 = sphi 0, %s38
      %s27 = sphi 0, %s34
      %s28 = sphi 0, %s26
      %s29 = sphi 0, %s27
      %s30 = sphi 0, %s28
      %s31 = sphi 0, %s29
      %s43 = sphi 0, %s45
      %s46 = sphi 0, %s43
      %s47 = sphi 0, %s46
      %s63 = sphi 0, %s47
      %s69 = sphi 0, %s71
      %s72 = sphi 0, %s69
      %s73 = sphi 0, %s72
      %s89 = sphi 0, %s73
      %s93 = sphi 0, %s93
      %s95 = sphi 0, %s93
      %s96 = sphi 0, %s95
      %s110 = sphi 0, %s96
      %s114 = sphi 0, %s114
      %s116 = sphi 0, %s114
      %s117 = sphi 0, %s116
      %s131 = sphi 0, %s117
      %s135 = sphi 0, %s135
      %s137 = sphi 0, %s135
      %s138 = sphi 0, %s137
      %s152 = sphi 0, %s138
      %s156 = sphi 0, %s156
      %s158 = sphi 0, %s156
      %s159 = sphi 0, %s158
      %s173 = sphi 0, %s159
      %s177 = sphi 0, %s177
      %s179 = sphi 0, %s177
      %s180 = sphi 0, %s179
      %s194 = sphi 0, %s180
      %s202 = sphi 0, %s204
      %s205 = sphi 0, %s202
      %s206 = sphi 0, %s205
      %s222 = sphi 0, %s206
    $region4: #{tpu_custom_call.1} parent=1 // loop_header_branch
      %22 = sbr.rel (%p20) target = $region8
    $region5: #{tpu_custom_call.1} parent=1 // loop_body
      %s24 = ssub.s32 %s19, 1
      %s25 = ssub.s32 %s19, 2
      %s32 = sadd.s32 1, %s27
      %p33 = scmp.ge.s32.totalorder %s32, 1
      %s34 = scalar_select %p33, 0, %s32
      %s35 = sadd.s32 1, %s26
      %s36 = scalar_select %p33, %s35, %s26
      %p37 = scmp.ge.s32.totalorder %s36, 2
      %s38 = scalar_select %p37, 0, %s36
      %s39 = ssub.s32 %s26, %s38
      %s40 = ssub.s32 %s27, %s34
      %s41 = sor.u32 %s39, %s40
      %p42 = scmp.eq.s32.totalorder %s41, 0
      %s44 = sadd.s32 %s43, 1
      %s45 = scalar_select %p42, %s43, %s44
      %p48 = pneg %p42
      %p49 = scmp.eq.s32.totalorder %s19, 1
      %p50 = por %p48, %p49
      %p51 = scmp.ne.s32.totalorder %s43, %s46
      %p52 = scmp.eq.s32.totalorder %s19, 0
      %p53 = por %p51, %p52
      %p54 = scmp.ne.s32.totalorder %s43, %s46
      %p55 = scmp.eq.s32.totalorder %s24, 1
      %p56 = por %p54, %p55
      %p57 = scmp.ne.s32.totalorder %s46, %s47
      %p58 = scmp.eq.s32.totalorder %s24, 0
      %p59 = por %p57, %p58
      %p60 = scmp.ne.s32.totalorder %s46, %s47
      %p61 = scmp.eq.s32.totalorder %s25, 1
      %p62 = por %p60, %p61
      %p64 = scmp.ne.s32.totalorder %s47, %s63
      %p65 = scmp.eq.s32.totalorder %s25, 0
      %p66 = por %p64, %p65
      %s67 = ssub.s32 %s26, %s38
      %p68 = scmp.eq.s32.totalorder %s67, 0
      %s70 = sadd.s32 %s69, 1
      %s71 = scalar_select %p68, %s69, %s70
      %p74 = pneg %p68
      %p75 = scmp.eq.s32.totalorder %s19, 1
      %p76 = por %p74, %p75
      %p77 = scmp.ne.s32.totalorder %s69, %s72
      %p78 = scmp.eq.s32.totalorder %s19, 0
      %p79 = por %p77, %p78
      %p80 = scmp.ne.s32.totalorder %s69, %s72
      %p81 = scmp.eq.s32.totalorder %s24, 1
      %p82 = por %p80, %p81
      %p83 = scmp.ne.s32.totalorder %s72, %s73
      %p84 = scmp.eq.s32.totalorder %s24, 0
      %p85 = por %p83, %p84
      %p86 = scmp.ne.s32.totalorder %s72, %s73
      %p87 = scmp.eq.s32.totalorder %s25, 1
      %p88 = por %p86, %p87
      %p90 = scmp.ne.s32.totalorder %s73, %s89
      %p91 = scmp.eq.s32.totalorder %s25, 0
      %p92 = por %p90, %p91
      %s94 = sadd.s32 %s93, 1
      %p97 = scmp.eq.s32.totalorder %s19, 1
      %p98 = scmp.ne.s32.totalorder %s93, %s95
      %p99 = scmp.eq.s32.totalorder %s19, 0
      %p100 = por %p98, %p99
      %p101 = scmp.ne.s32.totalorder %s93, %s95
      %p102 = scmp.eq.s32.totalorder %s24, 1
      %p103 = por %p101, %p102
      %p104 = scmp.ne.s32.totalorder %s95, %s96
      %p105 = scmp.eq.s32.totalorder %s24, 0
      %p106 = por %p104, %p105
      %p107 = scmp.ne.s32.totalorder %s95, %s96
      %p108 = scmp.eq.s32.totalorder %s25, 1
      %p109 = por %p107, %p108
      %p111 = scmp.ne.s32.totalorder %s96, %s110
      %p112 = scmp.eq.s32.totalorder %s25, 0
      %p113 = por %p111, %p112
      %s115 = sadd.s32 %s114, 1
      %p118 = scmp.eq.s32.totalorder %s19, 1
      %p119 = scmp.ne.s32.totalorder %s114, %s116
      %p120 = scmp.eq.s32.totalorder %s19, 0
      %p121 = por %p119, %p120
      %p122 = scmp.ne.s32.totalorder %s114, %s116
      %p123 = scmp.eq.s32.totalorder %s24, 1
      %p124 = por %p122, %p123
      %p125 = scmp.ne.s32.totalorder %s116, %s117
      %p126 = scmp.eq.s32.totalorder %s24, 0
      %p127 = por %p125, %p126
      %p128 = scmp.ne.s32.totalorder %s116, %s117
      %p129 = scmp.eq.s32.totalorder %s25, 1
      %p130 = por %p128, %p129
      %p132 = scmp.ne.s32.totalorder %s117, %s131
      %p133 = scmp.eq.s32.totalorder %s25, 0
      %p134 = por %p132, %p133
      %s136 = sadd.s32 %s135, 1
      %p139 = scmp.eq.s32.totalorder %s19, 1
      %p140 = scmp.ne.s32.totalorder %s135, %s137
      %p141 = scmp.eq.s32.totalorder %s19, 0
      %p142 = por %p140, %p141
      %p143 = scmp.ne.s32.totalorder %s135, %s137
      %p144 = scmp.eq.s32.totalorder %s24, 1
      %p145 = por %p143, %p144
      %p146 = scmp.ne.s32.totalorder %s137, %s138
      %p147 = scmp.eq.s32.totalorder %s24, 0
      %p148 = por %p146, %p147
      %p149 = scmp.ne.s32.totalorder %s137, %s138
      %p150 = scmp.eq.s32.totalorder %s25, 1
      %p151 = por %p149, %p150
      %p153 = scmp.ne.s32.totalorder %s138, %s152
      %p154 = scmp.eq.s32.totalorder %s25, 0
      %p155 = por %p153, %p154
      %s157 = sadd.s32 %s156, 1
      %p160 = scmp.eq.s32.totalorder %s19, 1
      %p161 = scmp.ne.s32.totalorder %s156, %s158
      %p162 = scmp.eq.s32.totalorder %s19, 0
      %p163 = por %p161, %p162
      %p164 = scmp.ne.s32.totalorder %s156, %s158
      %p165 = scmp.eq.s32.totalorder %s24, 1
      %p166 = por %p164, %p165
      %p167 = scmp.ne.s32.totalorder %s158, %s159
      %p168 = scmp.eq.s32.totalorder %s24, 0
      %p169 = por %p167, %p168
      %p170 = scmp.ne.s32.totalorder %s158, %s159
      %p171 = scmp.eq.s32.totalorder %s25, 1
      %p172 = por %p170, %p171
      %p174 = scmp.ne.s32.totalorder %s159, %s173
      %p175 = scmp.eq.s32.totalorder %s25, 0
      %p176 = por %p174, %p175
      %s178 = sadd.s32 %s177, 1
      %p181 = scmp.eq.s32.totalorder %s19, 1
      %p182 = scmp.ne.s32.totalorder %s177, %s179
      %p183 = scmp.eq.s32.totalorder %s19, 0
      %p184 = por %p182, %p183
      %p185 = scmp.ne.s32.totalorder %s177, %s179
      %p186 = scmp.eq.s32.totalorder %s24, 1
      %p187 = por %p185, %p186
      %p188 = scmp.ne.s32.totalorder %s179, %s180
      %p189 = scmp.eq.s32.totalorder %s24, 0
      %p190 = por %p188, %p189
      %p191 = scmp.ne.s32.totalorder %s179, %s180
      %p192 = scmp.eq.s32.totalorder %s25, 1
      %p193 = por %p191, %p192
      %p195 = scmp.ne.s32.totalorder %s180, %s194
      %p196 = scmp.eq.s32.totalorder %s25, 0
      %p197 = por %p195, %p196
      %s198 = ssub.s32 %s26, %s38
      %s199 = ssub.s32 %s27, %s34
      %s200 = sor.u32 %s198, %s199
      %p201 = scmp.eq.s32.totalorder %s200, 0
      %s203 = sadd.s32 %s202, 1
      %s204 = scalar_select %p201, %s202, %s203
      %p207 = pneg %p201
      %p208 = scmp.eq.s32.totalorder %s19, 1
      %p209 = por %p207, %p208
      %p210 = scmp.ne.s32.totalorder %s202, %s205
      %p211 = scmp.eq.s32.totalorder %s19, 0
      %p212 = por %p210, %p211
      %p213 = scmp.ne.s32.totalorder %s202, %s205
      %p214 = scmp.eq.s32.totalorder %s24, 1
      %p215 = por %p213, %p214
      %p216 = scmp.ne.s32.totalorder %s205, %s206
      %p217 = scmp.eq.s32.totalorder %s24, 0
      %p218 = por %p216, %p217
      %p219 = scmp.ne.s32.totalorder %s205, %s206
      %p220 = scmp.eq.s32.totalorder %s25, 1
      %p221 = por %p219, %p220
      %p223 = scmp.ne.s32.totalorder %s206, %s222
      %p224 = scmp.eq.s32.totalorder %s25, 0
      %p225 = por %p223, %p224
      %p226 = scmp.le.s32.totalorder 1, %s19
      %p227 = scmp.lt.s32.totalorder %s19, 3
      %p228 = pnand %p226, %p227
      %p229 = pneg %p228
      // Predicated region
      $region9: #{tpu_custom_call.1} parent=5 // pred_check
        _
      $region10: #{tpu_custom_call.1} parent=5 // pred_check_branch
        %231 = sbr.rel (%p228) target = $region12
      $region11: #{tpu_custom_call.1} parent=5 // pred_region
        %s232 = ssub.s32 %s19, 1
        // Predicated region
        $region13: #{tpu_custom_call.1} parent=11 // pred_check
          %p233 = pneg %p106
        $region14: #{tpu_custom_call.1} parent=11 // pred_check_branch
          %235 = sbr.rel (%p233) target = $region16
        $region15: #{tpu_custom_call.1} parent=11 // pred_region
          _
        $region16: #{tpu_custom_call.1} parent=11 // pred_fallthru
          _
        // Predicated region
        $region17: #{tpu_custom_call.1} parent=11 // pred_check
          %p236 = pneg %p127
        $region18: #{tpu_custom_call.1} parent=11 // pred_check_branch
          %238 = sbr.rel (%p236) target = $region20
        $region19: #{tpu_custom_call.1} parent=11 // pred_region
          _
        $region20: #{tpu_custom_call.1} parent=11 // pred_fallthru
          _
        // Predicated region
        $region21: #{tpu_custom_call.1} parent=11 // pred_check
          %p239 = pneg %p148
        $region22: #{tpu_custom_call.1} parent=11 // pred_check_branch
          %241 = sbr.rel (%p239) target = $region24
        $region23: #{tpu_custom_call.1} parent=11 // pred_region
          _
        $region24: #{tpu_custom_call.1} parent=11 // pred_fallthru
          _
        // Predicated region
        $region25: #{tpu_custom_call.1} parent=11 // pred_check
          %p242 = pneg %p169
        $region26: #{tpu_custom_call.1} parent=11 // pred_check_branch
          %244 = sbr.rel (%p242) target = $region28
        $region27: #{tpu_custom_call.1} parent=11 // pred_region
          _
        $region28: #{tpu_custom_call.1} parent=11 // pred_fallthru
          _
        // Predicated region
        $region29: #{tpu_custom_call.1} parent=11 // pred_check
          %p245 = pneg %p190
        $region30: #{tpu_custom_call.1} parent=11 // pred_check_branch
          %247 = sbr.rel (%p245) target = $region32
        $region31: #{tpu_custom_call.1} parent=11 // pred_region
          _
        $region32: #{tpu_custom_call.1} parent=11 // pred_fallthru
          _
      $region12: #{tpu_custom_call.1} parent=5 // pred_fallthru
        _
      %p248 = scmp.lt.s32.totalorder %s19, 2
      // Predicated region
      $region33: #{tpu_custom_call.1} parent=5 // pred_check
        %p249 = pneg %p248
      $region34: #{tpu_custom_call.1} parent=5 // pred_check_branch
        %251 = sbr.rel (%p249) target = $region36
      $region35: #{tpu_custom_call.1} parent=5 // pred_region
        // Predicated region
        $region37: #{tpu_custom_call.1} parent=35 // pred_check
          %p252 = pneg %p53
        $region38: #{tpu_custom_call.1} parent=35 // pred_check_branch
          %254 = sbr.rel (%p252) target = $region40
        $region39: #{tpu_custom_call.1} parent=35 // pred_region
          %s255 = sand.u32 %s43, 1
          %s256 = scalar_lea.sflag [#allocation3], %s255
          %s257 = sand.u32 %s43, 1
          %s258 = smul.addr %s257, 128
          %s259 = scalar_lea.vmem [#allocation2], %s258
          %s260 = smul.u32 4, %s27
          %s262 = ssub.s32 2048, 2048
          %263 = vsyncadd %s256, %s262
          %s264 = smul.addr %s26, 16
          %s265 = sadd.s32 %s260, %s264
          %s266 = smul.addr %s265, 128
          %s267 = scalar_lea.hbm %s0, %s266
          %s268 = sshll.u32 %s259, 4
          %s269 = int_to_ptr.vmem [resolvable:$true] %s268
          %274 = dma.hbm_to_vmem [thread:$0]  %s267, 2048, %s269, %s256, 512, 512, 32
        $region40: #{tpu_custom_call.1} parent=35 // pred_fallthru
          _
        // Predicated region
        $region41: #{tpu_custom_call.1} parent=35 // pred_check
          %p275 = pneg %p79
        $region42: #{tpu_custom_call.1} parent=35 // pred_check_branch
          %277 = sbr.rel (%p275) target = $region44
        $region43: #{tpu_custom_call.1} parent=35 // pred_region
          %p278 = scmp.lt.s32.totalorder %s26, 1
          %s279 = scalar_select %p278, %s26, 1
          %s280 = smul.addr %s279, 4
          %s281 = smul.addr %s280, 8
          %s282 = scalar_lea.vmem %s1, %s281
        $region44: #{tpu_custom_call.1} parent=35 // pred_fallthru
          _
      $region36: #{tpu_custom_call.1} parent=5 // pred_fallthru
        _
      %p283 = scmp.le.s32.totalorder 1, %s19
      %p284 = scmp.lt.s32.totalorder %s19, 3
      %p285 = pnand %p283, %p284
      %p286 = pneg %p285
      // Predicated region
      $region45: #{tpu_custom_call.1} parent=5 // pred_check
        _
      $region46: #{tpu_custom_call.1} parent=5 // pred_check_branch
        %288 = sbr.rel (%p285) target = $region48
      $region47: #{tpu_custom_call.1} parent=5 // pred_region
        %s289 = ssub.s32 %s19, 1
        %s290 = sand.u32 %s46, 1
        %s291 = scalar_lea.sflag [#allocation3], %s290
        %s292 = sand.u32 %s46, 1
        %s293 = smul.addr %s292, 128
        %s294 = scalar_lea.vmem [#allocation2], %s293
        // Predicated region
        $region49: #{tpu_custom_call.1} parent=47 // pred_check
          %p295 = pneg %p59
        $region50: #{tpu_custom_call.1} parent=47 // pred_check_branch
          %297 = sbr.rel (%p295) target = $region52
        $region51: #{tpu_custom_call.1} parent=47 // pred_region
          %298 = dma.done %s291, 2048
        $region52: #{tpu_custom_call.1} parent=47 // pred_fallthru
          _
        %s299 = sand.u32 %s46, 1
        %s300 = scalar_lea.sflag [#allocation3], %s299
        %s301 = sand.u32 %s46, 1
        %s302 = smul.addr %s301, 128
        %s303 = scalar_lea.vmem [#allocation2], %s302
        %p304 = pneg %p59
        %p305 = pneg %p56
        %p306 = scmp.lt.s32.totalorder %s28, 1
        %s307 = scalar_select %p306, %s28, 1
        %s308 = smul.addr %s307, 4
        %s309 = smul.addr %s308, 8
        %s310 = scalar_lea.vmem %s1, %s309
        %p311 = pneg %p85
        %p312 = pneg %p82
        %p313 = pneg %p106
        %p314 = pneg %p103
        %p315 = pneg %p127
        %p316 = pneg %p124
        %p317 = pneg %p148
        %p318 = pneg %p145
        %p319 = pneg %p169
        %p320 = pneg %p166
        %p321 = pneg %p190
        %p322 = pneg %p187
        %p323 = pneg %p218
        %p324 = pneg %p215
        %s325 = sand.u32 %s205, 1
        %s326 = scalar_lea.sflag [#allocation4], %s325
        %s327 = sand.u32 %s205, 1
        %s328 = smul.addr %s327, 16
        %s329 = scalar_lea.vmem [#allocation5], %s328
        %s330 = smul.u32 4, %s29
        %p331 = scmp.lt.s32.totalorder %s28, 1
        %s332 = scalar_select %p331, %s28, 1
        %s333 = smul.addr %s332, 4
        %s334 = smul.addr %s333, 8
        %s335 = scalar_lea.vmem %s1, %s334
        %s336 = smul.u32 4, %s29
        %v338 = vld [vmem:[%s294] sm:$0xff]
        %v339 = vld [vmem:[%s294 + $0x8] sm:$0xff]
        %v340 = vld [vmem:[%s294 + $0x10] sm:$0xff]
        %v341 = vld [vmem:[%s294 + $0x18] sm:$0xff]
        %v342 = vld [vmem:[%s294 + $0x20] sm:$0xff]
        %v343 = vld [vmem:[%s294 + $0x28] sm:$0xff]
        %v344 = vld [vmem:[%s294 + $0x30] sm:$0xff]
        %v345 = vld [vmem:[%s294 + $0x38] sm:$0xff]
        %v346 = vld [vmem:[%s294 + $0x40] sm:$0xff]
        %v347 = vld [vmem:[%s294 + $0x48] sm:$0xff]
        %v348 = vld [vmem:[%s294 + $0x50] sm:$0xff]
        %v349 = vld [vmem:[%s294 + $0x58] sm:$0xff]
        %v350 = vld [vmem:[%s294 + $0x60] sm:$0xff]
        %v351 = vld [vmem:[%s294 + $0x68] sm:$0xff]
        %v352 = vld [vmem:[%s294 + $0x70] sm:$0xff]
        %v353 = vld [vmem:[%s294 + $0x78] sm:$0xff]
        %v354 = vpack.c.bf16 %v342, %v338
        %v355 = vpack.c.bf16 %v343, %v339
        %v356 = vpack.c.bf16 %v344, %v340
        %v357 = vpack.c.bf16 %v345, %v341
        %v358 = vpack.c.bf16 %v350, %v346
        %v359 = vpack.c.bf16 %v351, %v347
        %v360 = vpack.c.bf16 %v352, %v348
        %v361 = vpack.c.bf16 %v353, %v349
        %v362 = vld [vmem:[%s2] sm:$0xf]
        %v363 = vld [vmem:[%s2 + $0x4] sm:$0xf]
        %v364 = vld [vmem:[%s2 + $0x8] sm:$0xf]
        %v365 = vld [vmem:[%s2 + $0xc] sm:$0xf]
        %v366 = vld [vmem:[%s335] sm:$0xff]
        %v367 = vld [vmem:[%s335 + $0x8] sm:$0xff]
        %v368 = vld [vmem:[%s335 + $0x10] sm:$0xff]
        %v369 = vld [vmem:[%s335 + $0x18] sm:$0xff]
        %371 = vset.pattern.permute.xlu0 0
        %372 = vperm.xlu0 %371, %v366
        %v373 = vpop.permute.xlu0 %372
        %376 = vset.pattern.permute.xlu0 0
        %377 = vperm.xlu0 %376, %v367
        %v378 = vpop.permute.xlu0 %377
        %381 = vset.pattern.permute.xlu0 0
        %382 = vperm.xlu0 %381, %v368
        %v383 = vpop.permute.xlu0 %382
        %386 = vset.pattern.permute.xlu0 0
        %387 = vperm.xlu0 %386, %v369
        %v388 = vpop.permute.xlu0 %387
        %v394 = vunpack.c.l.b16 %v362
        %v395 = vunpack.c.l.b16 %v363
        %v396 = vunpack.c.l.b16 %v364
        %v397 = vunpack.c.l.b16 %v365
        %v398 = vpack.c.b16 %v395, %v394
        %v399 = vpack.c.b16 %v397, %v396
        %vm400 = vcmask 261120
        %v402 = vsel %vm400, %v398, 0
        %v405 = vsel %vm400, %v399, 0
        %407 = vmatprep.subr.bf16.mxu0 %v355
        %408 = vmatpush1.bf16.msra.mxu0 %v354
        %409 = vmatprep.subr.bf16.mxu0 %v359
        %410 = vmatpush1.bf16.msra.mxu0 %v358
        %411 = vmatprep.subr.bf16.mxu0 0
        %412 = vmatpush1.bf16.msra.mxu0 0
        %413 = vmatprep.subr.bf16.mxu0 0
        %414 = vmatpush1.bf16.msra.mxu0 0
        %415 = vmatprep.subr.bf16.mxu0 0
        %416 = vmatpush1.bf16.msra.mxu0 0
        %417 = vmatprep.subr.bf16.mxu0 0
        %418 = vmatpush1.bf16.msra.mxu0 0
        %419 = vmatprep.subr.bf16.mxu0 0
        %420 = vmatpush1.bf16.msra.mxu0 0
        %421 = vmatprep.subr.bf16.mxu0 0
        %422 = vmatpush1.bf16.msra.mxu0 0
        %423 = vmatprep.subr.bf16.mxu0 0
        %424 = vmatpush1.bf16.msra.mxu0 0
        %425 = vmatprep.subr.bf16.mxu0 0
        %426 = vmatpush1.bf16.msra.mxu0 0
        %427 = vmatprep.subr.bf16.mxu0 0
        %428 = vmatpush1.bf16.msra.mxu0 0
        %429 = vmatprep.subr.bf16.mxu0 0
        %430 = vmatpush1.bf16.msra.mxu0 0
        %431 = vmatprep.subr.bf16.mxu0 0
        %432 = vmatpush1.bf16.msra.mxu0 0
        %433 = vmatprep.subr.bf16.mxu0 0
        %434 = vmatpush1.bf16.msra.mxu0 0
        %435 = vmatprep.subr.bf16.mxu0 0
        %436 = vmatpush1.bf16.msra.mxu0 0
        %437 = vmatprep.subr.bf16.mxu0 0
        %438 = vmatpush1.bf16.msra.mxu0 0
        %439 = vmatprep.mubr.bf16.mxu0 0
        %440 = vmatmul.mubr.bf16.gmra.mrb[0].mxu0 %v402
        %v441 = vpop.f32.mrb[0].mxu0
        %v442 = vadd.f32 %v373, %v441
        %v443 = vpop.f32.mrb[0].mxu0
        %v444 = vadd.f32 %v373, %v443
        %v445 = vpop.f32.mrb[0].mxu0
        %v446 = vadd.f32 %v378, %v445
        %v447 = vpop.f32.mrb[0].mxu0
        %v448 = vadd.f32 %v378, %v447
        %449 = vmatprep.mubr.bf16.mxu0 0
        %450 = vmatmul.mubr.bf16.gmra.mrb[0].mxu0 %v405
        %v451 = vpop.f32.mrb[0].mxu0
        %v452 = vadd.f32 %v383, %v451
        %v453 = vpop.f32.mrb[0].mxu0
        %v454 = vadd.f32 %v383, %v453
        %v455 = vpop.f32.mrb[0].mxu0
        %v456 = vadd.f32 %v388, %v455
        %v457 = vpop.f32.mrb[0].mxu0
        %v458 = vadd.f32 %v388, %v457
        %459 = vdwg.mxu0
        %460 = vmatprep.subr.bf16.mxu0 %v357
        %461 = vmatpush1.bf16.msra.mxu0 %v356
        %462 = vmatprep.subr.bf16.mxu0 %v361
        %463 = vmatpush1.bf16.msra.mxu0 %v360
        %464 = vmatprep.subr.bf16.mxu0 0
        %465 = vmatpush1.bf16.msra.mxu0 0
        %466 = vmatprep.subr.bf16.mxu0 0
        %467 = vmatpush1.bf16.msra.mxu0 0
        %468 = vmatprep.subr.bf16.mxu0 0
        %469 = vmatpush1.bf16.msra.mxu0 0
        %470 = vmatprep.subr.bf16.mxu0 0
        %471 = vmatpush1.bf16.msra.mxu0 0
        %472 = vmatprep.subr.bf16.mxu0 0
        %473 = vmatpush1.bf16.msra.mxu0 0
        %474 = vmatprep.subr.bf16.mxu0 0
        %475 = vmatpush1.bf16.msra.mxu0 0
        %476 = vmatprep.subr.bf16.mxu0 0
        %477 = vmatpush1.bf16.msra.mxu0 0
        %478 = vmatprep.subr.bf16.mxu0 0
        %479 = vmatpush1.bf16.msra.mxu0 0
        %480 = vmatprep.subr.bf16.mxu0 0
        %481 = vmatpush1.bf16.msra.mxu0 0
        %482 = vmatprep.subr.bf16.mxu0 0
        %483 = vmatpush1.bf16.msra.mxu0 0
        %484 = vmatprep.subr.bf16.mxu0 0
        %485 = vmatpush1.bf16.msra.mxu0 0
        %486 = vmatprep.subr.bf16.mxu0 0
        %487 = vmatpush1.bf16.msra.mxu0 0
        %488 = vmatprep.subr.bf16.mxu0 0
        %489 = vmatpush1.bf16.msra.mxu0 0
        %490 = vmatprep.subr.bf16.mxu0 0
        %491 = vmatpush1.bf16.msra.mxu0 0
        %492 = vmatprep.mubr.bf16.mxu0 0
        %493 = vmatmul.mubr.bf16.gmra.mrb[0].mxu0 %v402
        %v494 = vpop.f32.mrb[0].mxu0
        %v495 = vadd.f32 %v373, %v494
        %v496 = vpop.f32.mrb[0].mxu0
        %v497 = vadd.f32 %v373, %v496
        %v498 = vpop.f32.mrb[0].mxu0
        %v499 = vadd.f32 %v378, %v498
        %v500 = vpop.f32.mrb[0].mxu0
        %v501 = vadd.f32 %v378, %v500
        %502 = vmatprep.mubr.bf16.mxu0 0
        %503 = vmatmul.mubr.bf16.gmra.mrb[0].mxu0 %v405
        %v504 = vpop.f32.mrb[0].mxu0
        %v505 = vadd.f32 %v383, %v504
        %v506 = vpop.f32.mrb[0].mxu0
        %v507 = vadd.f32 %v383, %v506
        %v508 = vpop.f32.mrb[0].mxu0
        %v509 = vadd.f32 %v388, %v508
        %v510 = vpop.f32.mrb[0].mxu0
        %v511 = vadd.f32 %v388, %v510
        %512 = vdwg.mxu0
        %v513 = vmax.f32 %v442, 0.0
        %v514 = vmax.f32 %v444, 0.0
        %v515 = vmax.f32 %v495, 0.0
        %v516 = vmax.f32 %v497, 0.0
        %v517 = vmax.f32 %v446, 0.0
        %v518 = vmax.f32 %v448, 0.0
        %v519 = vmax.f32 %v499, 0.0
        %v520 = vmax.f32 %v501, 0.0
        %v521 = vmax.f32 %v452, 0.0
        %v522 = vmax.f32 %v454, 0.0
        %v523 = vmax.f32 %v505, 0.0
        %v524 = vmax.f32 %v507, 0.0
        %v525 = vmax.f32 %v456, 0.0
        %v526 = vmax.f32 %v458, 0.0
        %v527 = vmax.f32 %v509, 0.0
        %v528 = vmax.f32 %v511, 0.0
        %v529 = vld [vmem:[%s3] sm:$0xf]
        %v530 = vld [vmem:[%s3 + $0x4] sm:$0xf]
        %v531 = vld [vmem:[%s3 + $0x8] sm:$0xf]
        %v532 = vld [vmem:[%s3 + $0xc] sm:$0xf]
        %v533 = vpack.c.bf16 %v517, %v513
        %v534 = vpack.c.bf16 %v518, %v514
        %v535 = vpack.c.bf16 %v519, %v515
        %v536 = vpack.c.bf16 %v520, %v516
        %v537 = vpack.c.bf16 %v525, %v521
        %v538 = vpack.c.bf16 %v526, %v522
        %v539 = vpack.c.bf16 %v527, %v523
        %v540 = vpack.c.bf16 %v528, %v524
        %v541 = vld [vmem:[%s4] sm:$0xff]
        %v542 = vld [vmem:[%s4 + $0x8] sm:$0xff]
        %v543 = vld [vmem:[%s4 + $0x10] sm:$0xff]
        %v544 = vld [vmem:[%s4 + $0x18] sm:$0xff]
        %546 = vset.pattern.permute.xlu0 0
        %547 = vperm.xlu0 %546, %v541
        %v548 = vpop.permute.xlu0 %547
        %551 = vset.pattern.permute.xlu0 0
        %552 = vperm.xlu0 %551, %v542
        %v553 = vpop.permute.xlu0 %552
        %556 = vset.pattern.permute.xlu0 0
        %557 = vperm.xlu0 %556, %v543
        %v558 = vpop.permute.xlu0 %557
        %561 = vset.pattern.permute.xlu0 0
        %562 = vperm.xlu0 %561, %v544
        %v563 = vpop.permute.xlu0 %562
        %v569 = vunpack.c.l.b16 %v529
        %v570 = vunpack.c.l.b16 %v530
        %v571 = vunpack.c.l.b16 %v531
        %v572 = vunpack.c.l.b16 %v532
        %v573 = vpack.c.b16 %v570, %v569
        %v574 = vpack.c.b16 %v572, %v571
        %v576 = vsel %vm400, %v573, 0
        %v579 = vsel %vm400, %v574, 0
        %581 = vmatprep.subr.bf16.mxu0 %v534
        %582 = vmatpush1.bf16.msra.mxu0 %v533
        %583 = vmatprep.subr.bf16.mxu0 %v538
        %584 = vmatpush1.bf16.msra.mxu0 %v537
        %585 = vmatprep.subr.bf16.mxu0 0
        %586 = vmatpush1.bf16.msra.mxu0 0
        %587 = vmatprep.subr.bf16.mxu0 0
        %588 = vmatpush1.bf16.msra.mxu0 0
        %589 = vmatprep.subr.bf16.mxu0 0
        %590 = vmatpush1.bf16.msra.mxu0 0
        %591 = vmatprep.subr.bf16.mxu0 0
        %592 = vmatpush1.bf16.msra.mxu0 0
        %593 = vmatprep.subr.bf16.mxu0 0
        %594 = vmatpush1.bf16.msra.mxu0 0
        %595 = vmatprep.subr.bf16.mxu0 0
        %596 = vmatpush1.bf16.msra.mxu0 0
        %597 = vmatprep.subr.bf16.mxu0 0
        %598 = vmatpush1.bf16.msra.mxu0 0
        %599 = vmatprep.subr.bf16.mxu0 0
        %600 = vmatpush1.bf16.msra.mxu0 0
        %601 = vmatprep.subr.bf16.mxu0 0
        %602 = vmatpush1.bf16.msra.mxu0 0
        %603 = vmatprep.subr.bf16.mxu0 0
        %604 = vmatpush1.bf16.msra.mxu0 0
        %605 = vmatprep.subr.bf16.mxu0 0
        %606 = vmatpush1.bf16.msra.mxu0 0
        %607 = vmatprep.subr.bf16.mxu0 0
        %608 = vmatpush1.bf16.msra.mxu0 0
        %609 = vmatprep.subr.bf16.mxu0 0
        %610 = vmatpush1.bf16.msra.mxu0 0
        %611 = vmatprep.subr.bf16.mxu0 0
        %612 = vmatpush1.bf16.msra.mxu0 0
        %613 = vmatprep.mubr.bf16.mxu0 0
        %614 = vmatmul.mubr.bf16.gmra.mrb[0].mxu0 %v576
        %v615 = vpop.f32.mrb[0].mxu0
        %v616 = vadd.f32 %v548, %v615
        %v617 = vpop.f32.mrb[0].mxu0
        %v618 = vadd.f32 %v548, %v617
        %v619 = vpop.f32.mrb[0].mxu0
        %v620 = vadd.f32 %v553, %v619
        %v621 = vpop.f32.mrb[0].mxu0
        %v622 = vadd.f32 %v553, %v621
        %623 = vmatprep.mubr.bf16.mxu0 0
        %624 = vmatmul.mubr.bf16.gmra.mrb[0].mxu0 %v579
        %v625 = vpop.f32.mrb[0].mxu0
        %v626 = vadd.f32 %v558, %v625
        %v627 = vpop.f32.mrb[0].mxu0
        %v628 = vadd.f32 %v558, %v627
        %v629 = vpop.f32.mrb[0].mxu0
        %v630 = vadd.f32 %v563, %v629
        %v631 = vpop.f32.mrb[0].mxu0
        %v632 = vadd.f32 %v563, %v631
        %633 = vdwg.mxu0
        %634 = vmatprep.subr.bf16.mxu0 %v536
        %635 = vmatpush1.bf16.msra.mxu0 %v535
        %636 = vmatprep.subr.bf16.mxu0 %v540
        %637 = vmatpush1.bf16.msra.mxu0 %v539
        %638 = vmatprep.subr.bf16.mxu0 0
        %639 = vmatpush1.bf16.msra.mxu0 0
        %640 = vmatprep.subr.bf16.mxu0 0
        %641 = vmatpush1.bf16.msra.mxu0 0
        %642 = vmatprep.subr.bf16.mxu0 0
        %643 = vmatpush1.bf16.msra.mxu0 0
        %644 = vmatprep.subr.bf16.mxu0 0
        %645 = vmatpush1.bf16.msra.mxu0 0
        %646 = vmatprep.subr.bf16.mxu0 0
        %647 = vmatpush1.bf16.msra.mxu0 0
        %648 = vmatprep.subr.bf16.mxu0 0
        %649 = vmatpush1.bf16.msra.mxu0 0
        %650 = vmatprep.subr.bf16.mxu0 0
        %651 = vmatpush1.bf16.msra.mxu0 0
        %652 = vmatprep.subr.bf16.mxu0 0
        %653 = vmatpush1.bf16.msra.mxu0 0
        %654 = vmatprep.subr.bf16.mxu0 0
        %655 = vmatpush1.bf16.msra.mxu0 0
        %656 = vmatprep.subr.bf16.mxu0 0
        %657 = vmatpush1.bf16.msra.mxu0 0
        %658 = vmatprep.subr.bf16.mxu0 0
        %659 = vmatpush1.bf16.msra.mxu0 0
        %660 = vmatprep.subr.bf16.mxu0 0
        %661 = vmatpush1.bf16.msra.mxu0 0
        %662 = vmatprep.subr.bf16.mxu0 0
        %663 = vmatpush1.bf16.msra.mxu0 0
        %664 = vmatprep.subr.bf16.mxu0 0
        %665 = vmatpush1.bf16.msra.mxu0 0
        %666 = vmatprep.mubr.bf16.mxu0 0
        %667 = vmatmul.mubr.bf16.gmra.mrb[0].mxu0 %v576
        %v668 = vpop.f32.mrb[0].mxu0
        %v669 = vadd.f32 %v548, %v668
        %v670 = vpop.f32.mrb[0].mxu0
        %v671 = vadd.f32 %v548, %v670
        %v672 = vpop.f32.mrb[0].mxu0
        %v673 = vadd.f32 %v553, %v672
        %v674 = vpop.f32.mrb[0].mxu0
        %v675 = vadd.f32 %v553, %v674
        %676 = vmatprep.mubr.bf16.mxu0 0
        %677 = vmatmul.mubr.bf16.gmra.mrb[0].mxu0 %v579
        %v678 = vpop.f32.mrb[0].mxu0
        %v679 = vadd.f32 %v558, %v678
        %v680 = vpop.f32.mrb[0].mxu0
        %v681 = vadd.f32 %v558, %v680
        %v682 = vpop.f32.mrb[0].mxu0
        %v683 = vadd.f32 %v563, %v682
        %v684 = vpop.f32.mrb[0].mxu0
        %v685 = vadd.f32 %v563, %v684
        %686 = vdwg.mxu0
        %v687 = vmax.f32 %v616, 0.0
        %v688 = vmax.f32 %v618, 0.0
        %v689 = vmax.f32 %v669, 0.0
        %v690 = vmax.f32 %v671, 0.0
        %v691 = vmax.f32 %v620, 0.0
        %v692 = vmax.f32 %v622, 0.0
        %v693 = vmax.f32 %v673, 0.0
        %v694 = vmax.f32 %v675, 0.0
        %v695 = vmax.f32 %v626, 0.0
        %v696 = vmax.f32 %v628, 0.0
        %v697 = vmax.f32 %v679, 0.0
        %v698 = vmax.f32 %v681, 0.0
        %v699 = vmax.f32 %v630, 0.0
        %v700 = vmax.f32 %v632, 0.0
        %v701 = vmax.f32 %v683, 0.0
        %v702 = vmax.f32 %v685, 0.0
        %v703 = vld [vmem:[%s5] sm:$0x3]
        %v704 = vpack.c.bf16 %v691, %v687
        %v705 = vpack.c.bf16 %v692, %v688
        %v706 = vpack.c.bf16 %v693, %v689
        %v707 = vpack.c.bf16 %v694, %v690
        %v708 = vpack.c.bf16 %v699, %v695
        %v709 = vpack.c.bf16 %v700, %v696
        %v710 = vpack.c.bf16 %v701, %v697
        %v711 = vpack.c.bf16 %v702, %v698
        %v712 = vld [vmem:[%s6] sm:$0xf]
        %714 = vset.pattern.permute.xlu0 0
        %715 = vperm.xlu0 %714, %v712
        %v716 = vpop.permute.xlu0 %715
        %v719 = vsel %vm400, %v703, 0
        %721 = vmatprep.subr.bf16.mxu0 %v705
        %722 = vmatpush1.bf16.msra.mxu0 %v704
        %723 = vmatprep.subr.bf16.mxu0 %v709
        %724 = vmatpush1.bf16.msra.mxu0 %v708
        %725 = vmatprep.subr.bf16.mxu0 0
        %726 = vmatpush1.bf16.msra.mxu0 0
        %727 = vmatprep.subr.bf16.mxu0 0
        %728 = vmatpush1.bf16.msra.mxu0 0
        %729 = vmatprep.subr.bf16.mxu0 0
        %730 = vmatpush1.bf16.msra.mxu0 0
        %731 = vmatprep.subr.bf16.mxu0 0
        %732 = vmatpush1.bf16.msra.mxu0 0
        %733 = vmatprep.subr.bf16.mxu0 0
        %734 = vmatpush1.bf16.msra.mxu0 0
        %735 = vmatprep.subr.bf16.mxu0 0
        %736 = vmatpush1.bf16.msra.mxu0 0
        %737 = vmatprep.subr.bf16.mxu0 0
        %738 = vmatpush1.bf16.msra.mxu0 0
        %739 = vmatprep.subr.bf16.mxu0 0
        %740 = vmatpush1.bf16.msra.mxu0 0
        %741 = vmatprep.subr.bf16.mxu0 0
        %742 = vmatpush1.bf16.msra.mxu0 0
        %743 = vmatprep.subr.bf16.mxu0 0
        %744 = vmatpush1.bf16.msra.mxu0 0
        %745 = vmatprep.subr.bf16.mxu0 0
        %746 = vmatpush1.bf16.msra.mxu0 0
        %747 = vmatprep.subr.bf16.mxu0 0
        %748 = vmatpush1.bf16.msra.mxu0 0
        %749 = vmatprep.subr.bf16.mxu0 0
        %750 = vmatpush1.bf16.msra.mxu0 0
        %751 = vmatprep.subr.bf16.mxu0 0
        %752 = vmatpush1.bf16.msra.mxu0 0
        %753 = vmatprep.mubr.bf16.mxu0 0
        %754 = vmatmul.mubr.bf16.gmra.mrb[0].mxu0 %v719
        %v755 = vpop.f32.mrb[0].mxu0
        %v756 = vadd.f32 %v716, %v755
        %v757 = vpop.f32.mrb[0].mxu0
        %v758 = vadd.f32 %v716, %v757
        %v759 = vpop.f32.mrb[0].mxu0
        %v760 = vpop.f32.mrb[0].mxu0
        %761 = vdwg.mxu0
        %762 = vmatprep.subr.bf16.mxu0 %v707
        %763 = vmatpush1.bf16.msra.mxu0 %v706
        %764 = vmatprep.subr.bf16.mxu0 %v711
        %765 = vmatpush1.bf16.msra.mxu0 %v710
        %766 = vmatprep.subr.bf16.mxu0 0
        %767 = vmatpush1.bf16.msra.mxu0 0
        %768 = vmatprep.subr.bf16.mxu0 0
        %769 = vmatpush1.bf16.msra.mxu0 0
        %770 = vmatprep.subr.bf16.mxu0 0
        %771 = vmatpush1.bf16.msra.mxu0 0
        %772 = vmatprep.subr.bf16.mxu0 0
        %773 = vmatpush1.bf16.msra.mxu0 0
        %774 = vmatprep.subr.bf16.mxu0 0
        %775 = vmatpush1.bf16.msra.mxu0 0
        %776 = vmatprep.subr.bf16.mxu0 0
        %777 = vmatpush1.bf16.msra.mxu0 0
        %778 = vmatprep.subr.bf16.mxu0 0
        %779 = vmatpush1.bf16.msra.mxu0 0
        %780 = vmatprep.subr.bf16.mxu0 0
        %781 = vmatpush1.bf16.msra.mxu0 0
        %782 = vmatprep.subr.bf16.mxu0 0
        %783 = vmatpush1.bf16.msra.mxu0 0
        %784 = vmatprep.subr.bf16.mxu0 0
        %785 = vmatpush1.bf16.msra.mxu0 0
        %786 = vmatprep.subr.bf16.mxu0 0
        %787 = vmatpush1.bf16.msra.mxu0 0
        %788 = vmatprep.subr.bf16.mxu0 0
        %789 = vmatpush1.bf16.msra.mxu0 0
        %790 = vmatprep.subr.bf16.mxu0 0
        %791 = vmatpush1.bf16.msra.mxu0 0
        %792 = vmatprep.subr.bf16.mxu0 0
        %793 = vmatpush1.bf16.msra.mxu0 0
        %794 = vmatprep.mubr.bf16.mxu0 0
        %795 = vmatmul.mubr.bf16.gmra.mrb[0].mxu0 %v719
        %v796 = vpop.f32.mrb[0].mxu0
        %v797 = vadd.f32 %v716, %v796
        %v798 = vpop.f32.mrb[0].mxu0
        %v799 = vadd.f32 %v716, %v798
        %v800 = vpop.f32.mrb[0].mxu0
        %v801 = vpop.f32.mrb[0].mxu0
        %802 = vdwg.mxu0
        %v807 = vcombine.low %v756, %v758
        %v808 = vcombine.low %v797, %v799
        %811 = vst [vmem:[%s329] sm:$0xff] %v807
        %812 = vst [vmem:[%s329 + $0x8] sm:$0xff] %v808
        %s813 = sand.u32 %s205, 1
        %s814 = scalar_lea.sflag [#allocation4], %s813
        %s815 = sand.u32 %s205, 1
        %s816 = smul.addr %s815, 16
        %s817 = scalar_lea.vmem [#allocation5], %s816
        // Predicated region
        $region53: #{tpu_custom_call.1} parent=47 // pred_check
          %p818 = pneg %p215
        $region54: #{tpu_custom_call.1} parent=47 // pred_check_branch
          %820 = sbr.rel (%p818) target = $region56
        $region55: #{tpu_custom_call.1} parent=47 // pred_region
          %s821 = smul.u32 4, %s29
          %s823 = ssub.s32 256, 256
          %824 = vsyncadd %s814, %s823
          %s825 = smul.addr %s28, 4
          %s826 = sadd.s32 %s821, %s825
          %s827 = smul.addr %s826, 64
          %s828 = scalar_lea.hbm %s7, %s827
          %s830 = sshll.u32 %s817, 4
          %s831 = int_to_ptr.vmem [resolvable:$true] %s830
          %833 = dma.vmem_to_hbm [thread:$0]  %s831, 256, %s828, %s814
        $region56: #{tpu_custom_call.1} parent=47 // pred_fallthru
          _
      $region48: #{tpu_custom_call.1} parent=5 // pred_fallthru
        _
      %p834 = scmp.le.s32.totalorder 2, %s19
      // Predicated region
      $region57: #{tpu_custom_call.1} parent=5 // pred_check
        %p835 = pneg %p834
      $region58: #{tpu_custom_call.1} parent=5 // pred_check_branch
        %837 = sbr.rel (%p835) target = $region60
      $region59: #{tpu_custom_call.1} parent=5 // pred_region
        %s838 = ssub.s32 %s19, 2
        // Predicated region
        $region61: #{tpu_custom_call.1} parent=59 // pred_check
          %p839 = pneg %p221
        $region62: #{tpu_custom_call.1} parent=59 // pred_check_branch
          %841 = sbr.rel (%p839) target = $region64
        $region63: #{tpu_custom_call.1} parent=59 // pred_region
          %s842 = sand.u32 %s206, 1
          %s843 = scalar_lea.sflag [#allocation4], %s842
          %s844 = sand.u32 %s206, 1
          %s845 = smul.addr %s844, 16
          %s846 = scalar_lea.vmem [#allocation5], %s845
          %847 = dma.done %s843, 256
        $region64: #{tpu_custom_call.1} parent=59 // pred_fallthru
          _
      $region60: #{tpu_custom_call.1} parent=5 // pred_fallthru
        _
    $region6: #{tpu_custom_call.1} parent=1 // loop_footer
      %s23 = sadd.s32 1, %s19
    $region7: #{tpu_custom_call.1} parent=1 // loop_footer_branch
      %18 = sbr.rel target = $region3
    $region8: #{tpu_custom_call.1} parent=1 // loop_exit
      _
    %848 = vsyncpa [#allocation3], 1
    %s849 = scalar_lea.sflag [#allocation3], 1
    %850 = vsyncpa %s849, 1
    %851 = vsyncpa [#allocation4], 1
    %s852 = scalar_lea.sflag [#allocation4], 1
    %853 = vsyncpa %s852, 1

</llo_original>
